<compile_context>
chip_gen: v5e
topology: v5e:2x2
jax: 0.10.0
libtpu: 0.0.40
codegen_flags: <defaults>
</compile_context>

<pallas_src>
import jax
import jax.numpy as jnp
import numpy as np
from jax.experimental import pallas as pl
from jax.experimental.pallas import tpu as pltpu  # noqa: F401  (kept for TPU memory-space extensions)

DROPOUT_P = 0.5
KEEP_SCALE = 1.0 / (1.0 - DROPOUT_P)
# keep element iff uniform u >= p  <=>  raw uint32 bits >= p * 2^32
KEEP_THRESHOLD = np.uint32(int(DROPOUT_P * (1 << 32)) & 0xFFFFFFFF)


def sdpa_dropout_kernel(q_ref, k_ref, x1_ref, bits_ref, out_ref):
    q = q_ref[...]        # (B, M, D) f32
    k = k_ref[...]        # (B, N, D) f32
    x1 = x1_ref[...]      # (1, M, N) f32, broadcast over batch
    bits = bits_ref[...]  # (B, M, N) uint32 random bits

    # scores = q @ k^T, contracting the feature axis D directly (no transpose copy)
    s = jax.lax.dot_general(
        q, k,
        dimension_numbers=(((2,), (2,)), ((0,), (0,))),
        preferred_element_type=jnp.float32,
    )                                   # (B, M, N)
    s = s * x1                          # elementwise scale, broadcast over B

    # numerically-stable softmax along the last dim
    m = jnp.max(s, axis=-1, keepdims=True)
    e = jnp.exp(s - m)
    denom = jnp.sum(e, axis=-1, keepdims=True)          # (B, M, 1)

    # Fuse softmax normalization with the inverted-dropout rescale:
    # one division per row, one multiply per element.
    inv = jnp.float32(KEEP_SCALE) / denom

    keep = bits >= KEEP_THRESHOLD                        # Bernoulli(1 - p)
    out_ref[...] = jnp.where(keep, e * inv, jnp.float32(0.0))


def model_forward(query, key, x1, rng_key):
    """Returns v4 = dropout(softmax((query @ key^T) * x1, -1), p=0.5)."""
    B, M, D = query.shape
    _, N, _ = key.shape
    assert key.shape == (B, N, D)
    assert x1.shape == (1, M, N)

    # Raw uniform bits for the dropout mask (statistically equivalent to
    # torch dropout; the RNG stream obviously differs from PyTorch's).
    bits = jax.random.bits(rng_key, (B, M, N), dtype=jnp.uint32)

    cost = pl.CostEstimate(
        flops=2 * B * M * N * D,
        transcendentals=B * M * N,
        bytes_accessed=4 * (B * M * D + B * N * D + M * N + 2 * B * M * N),
    )

    return pl.pallas_call(
        sdpa_dropout_kernel,
        out_shape=jax.ShapeDtypeStruct((B, M, N), jnp.float32),
        in_specs=[
            pl.BlockSpec((B, M, D), lambda: (0, 0, 0)),  # query
            pl.BlockSpec((B, N, D), lambda: (0, 0, 0)),  # key
            pl.BlockSpec((1, M, N), lambda: (0, 0, 0)),  # x1 (broadcast over B)
            pl.BlockSpec((B, M, N), lambda: (0, 0, 0)),  # dropout random bits
        ],
        out_specs=pl.BlockSpec((B, M, N), lambda: (0, 0, 0)),
        cost_estimate=cost,
    )(query, key, x1, bits)


if __name__ == "__main__":
    # Small shapes consistent with the module layout: per-example query (M, D),
    # key/value (N, D), x1 (1, M, N); batch kept small.
    B, M, N, D = 4, 64, 128, 128

    k0 = jax.random.PRNGKey(0)
    kq, kk, kv, kx, kd = jax.random.split(k0, 5)
    query = jax.random.normal(kq, (B, M, D), dtype=jnp.float32)
    key_p = jax.random.normal(kk, (B, N, D), dtype=jnp.float32)
    value = jax.random.normal(kv, (B, N, D), dtype=jnp.float32)  # unused: dead code in Model.forward
    x1 = jax.random.normal(kx, (1, M, N), dtype=jnp.float32)

    out = model_forward(query, key_p, x1, kd)
    jax.block_until_ready(out)
    assert out.shape == (B, M, N)
    assert bool(jnp.all(jnp.isfinite(out)))
    print("KERNEL_OK")
</pallas_src>

<mosaic_0001>
module attributes {stable_mosaic.version = 11 : i64} {
  func.func @sdpa_dropout_kernel(%arg0: memref<4x64x128xf32, #tpu.memory_space<vmem>>, %arg1: memref<4x128x128xf32, #tpu.memory_space<vmem>>, %arg2: memref<1x64x128xf32, #tpu.memory_space<vmem>>, %arg3: memref<4x64x128xi32, #tpu.memory_space<vmem>>, %arg4: memref<4x64x128xf32, #tpu.memory_space<vmem>>) attributes {dimension_semantics = [], scalar_prefetch = 0 : i64, scratch_operands = 0 : i64, tpu.core_type = #tpu.core_type<tc>} {
    %c0 = arith.constant 0 : index
    %c0_0 = arith.constant 0 : index
    %c0_1 = arith.constant 0 : index
    %0 = vector.load %arg0[%c0, %c0_0, %c0_1] : memref<4x64x128xf32, #tpu.memory_space<vmem>>, vector<4x64x128xf32>
    %c0_2 = arith.constant 0 : index
    %c0_3 = arith.constant 0 : index
    %c0_4 = arith.constant 0 : index
    %1 = vector.load %arg1[%c0_2, %c0_3, %c0_4] : memref<4x128x128xf32, #tpu.memory_space<vmem>>, vector<4x128x128xf32>
    %c0_5 = arith.constant 0 : index
    %c0_6 = arith.constant 0 : index
    %c0_7 = arith.constant 0 : index
    %2 = vector.load %arg2[%c0_5, %c0_6, %c0_7] : memref<1x64x128xf32, #tpu.memory_space<vmem>>, vector<1x64x128xf32>
    %c0_8 = arith.constant 0 : index
    %c0_9 = arith.constant 0 : index
    %c0_10 = arith.constant 0 : index
    %3 = vector.load %arg3[%c0_8, %c0_9, %c0_10] : memref<4x64x128xi32, #tpu.memory_space<vmem>>, vector<4x64x128xi32>
    %cst = arith.constant dense<0.000000e+00> : vector<4x64x128xf32>
    %4 = tpu.matmul %0, %1, %cst {dimension_numbers = #tpu.dot_dimension_numbers<[2], [2], [1], [1], [0, 0, 0, 1, 1, 1], [0], [0]>} : vector<4x64x128xf32>, vector<4x128x128xf32>, vector<4x64x128xf32> -> vector<4x64x128xf32>
    %5 = vector.broadcast %2 : vector<1x64x128xf32> to vector<4x64x128xf32>
    %6 = arith.mulf %4, %5 : vector<4x64x128xf32>
    %cst_11 = arith.constant dense<0xFF800000> : vector<4x64xf32>
    %7 = vector.multi_reduction <maximumf>, %6, %cst_11 [2] : vector<4x64x128xf32> to vector<4x64xf32>
    %8 = vector.shape_cast %7 : vector<4x64xf32> to vector<4x64x1xf32>
    %9 = vector.broadcast %8 : vector<4x64x1xf32> to vector<4x64x128xf32>
    %10 = arith.subf %6, %9 : vector<4x64x128xf32>
    %11 = math.exp %10 : vector<4x64x128xf32>
    %cst_12 = arith.constant dense<0.000000e+00> : vector<4x64xf32>
    %12 = vector.multi_reduction <add>, %11, %cst_12 [2] : vector<4x64x128xf32> to vector<4x64xf32>
    %13 = vector.shape_cast %12 : vector<4x64xf32> to vector<4x64x1xf32>
    %cst_13 = arith.constant 2.000000e+00 : f32
    %14 = vector.broadcast %cst_13 : f32 to vector<4x64x1xf32>
    %15 = arith.divf %14, %13 : vector<4x64x1xf32>
    %c-2147483648_i32 = arith.constant -2147483648 : i32
    %16 = vector.broadcast %c-2147483648_i32 : i32 to vector<4x64x128xi32>
    %17 = arith.cmpi uge, %3, %16 : vector<4x64x128xi32>
    %18 = vector.broadcast %15 : vector<4x64x1xf32> to vector<4x64x128xf32>
    %19 = arith.mulf %11, %18 : vector<4x64x128xf32>
    %cst_14 = arith.constant 0.000000e+00 : f32
    %20 = vector.broadcast %cst_14 : f32 to vector<4x64x128xf32>
    %21 = arith.select %17, %19, %20 : vector<4x64x128xi1>, vector<4x64x128xf32>
    %c0_15 = arith.constant 0 : index
    %c0_16 = arith.constant 0 : index
    %c0_17 = arith.constant 0 : index
    %22 = vector.load %arg4[%c0_15, %c0_16, %c0_17] : memref<4x64x128xf32, #tpu.memory_space<vmem>>, vector<4x64x128xf32>
    tpu.vector_store %arg4[%c0_15, %c0_16, %c0_17], %21 {strides = array<i32>} : memref<4x64x128xf32, #tpu.memory_space<vmem>>, vector<4x64x128xf32>,
    return
  }
}

</mosaic_0001>

<llo_original>
// kernel: tpu_custom_call.1
$region0: #{tpu_custom_call.1}
  #allocation0 [shape = 'u32[]', space=smem, size = 0x4, offset = 0x4, fixed_abs, tag = 'smem constant byte address 0x4 - core index']
  #allocation1 [shape = 'u32[72,128]{1,0:T(1,128)}', space=vmem, size = 0x9000, scoped, tag = 'internal scratch']
  %s0 = inlined_call_operand.hbm [shape: f32[4,64,128], index: 0, kind: input, shape index: {}]
  %s1 = inlined_call_operand.hbm [shape: f32[4,128,128], index: 1, kind: input, shape index: {}]
  %s2 = inlined_call_operand.hbm [shape: f32[1,64,128], index: 2, kind: input, shape index: {}]
  %s3 = inlined_call_operand.hbm [shape: u32[4,64,128], index: 3, kind: input, shape index: {}]
  %s4 = inlined_call_operand.hbm [shape: f32[4,64,128], index: 4, kind: output, shape index: {}]
  %s5 = sld [smem:[#allocation0]]
  $region42: #{tpu_custom_call.1} parent=0
    _
  %s7 = ssub.s32 1, %s5
  %s8 = scalar_select 0, %s7, %s5
  $region1: #{tpu_custom_call.1} parent=0
    #allocation2 [shape = 'u8[131072]{0}', space=vmem, size = 0x20000, scoped, tag = 'input window, operand 0, single buffered']
    #allocation3 [shape = 's32[1]{0}', space=sflag, size = 0x4, scoped, tag = 'scoped memory for tpu_custom_call.1']
    #allocation4 [shape = 's32[1]{0}', space=sflag, size = 0x4, scoped, tag = 'scoped memory for tpu_custom_call.1']
    #allocation5 [shape = 'u8[262144]{0}', space=vmem, size = 0x40000, scoped, tag = 'input window, operand 1, single buffered']
    #allocation6 [shape = 's32[1]{0}', space=sflag, size = 0x4, scoped, tag = 'scoped memory for tpu_custom_call.1']
    #allocation7 [shape = 'u8[32768]{0}', space=vmem, size = 0x8000, scoped, tag = 'input window, operand 2, single buffered']
    #allocation8 [shape = 'u8[131072]{0}', space=vmem, size = 0x20000, scoped, tag = 'input window, operand 3, single buffered']
    #allocation9 [shape = 's32[1]{0}', space=sflag, size = 0x4, scoped, tag = 'scoped memory for tpu_custom_call.1']
    #allocation10 [shape = 'u8[131072]{0}', space=vmem, size = 0x20000, scoped, tag = 'output window, operand 0, single buffered']
    %9 = vsyncpa [#allocation3], 0
    %10 = vsyncpa [#allocation6], 0
    %11 = vsyncpa [#allocation9], 0
    %12 = vsyncpa [#allocation4], 0
    // Predicated region
    $region2: #{tpu_custom_call.1} parent=1 // pred_check
      _
    $region3: #{tpu_custom_call.1} parent=1 // pred_check_branch
      %14 = sbr.rel (0) target = $region5
    $region4: #{tpu_custom_call.1} parent=1 // pred_region
      %16 = vsyncadd [#allocation3], 0
      %s17 = sshll.u32 %s0, 4
      %s18 = int_to_ptr.hbm [resolvable:$true] %s17
      %s19 = sshll.u32 [#allocation2], 4
      %s20 = int_to_ptr.vmem [resolvable:$true] %s19
      %25 = dma.hbm_to_vmem [thread:$0]  %s18, 4096, %s20, [#allocation3], 128, 128, 8
    $region5: #{tpu_custom_call.1} parent=1 // pred_fallthru
      _
    // Predicated region
    $region6: #{tpu_custom_call.1} parent=1 // pred_check
      _
    $region7: #{tpu_custom_call.1} parent=1 // pred_check_branch
      %27 = sbr.rel (0) target = $region9
    $region8: #{tpu_custom_call.1} parent=1 // pred_region
      %29 = vsyncadd [#allocation6], 0
      %s30 = sshll.u32 %s1, 4
      %s31 = int_to_ptr.hbm [resolvable:$true] %s30
      %s32 = sshll.u32 [#allocation5], 4
      %s33 = int_to_ptr.vmem [resolvable:$true] %s32
      %38 = dma.hbm_to_vmem [thread:$0]  %s31, 8192, %s33, [#allocation6], 128, 128, 8
    $region9: #{tpu_custom_call.1} parent=1 // pred_fallthru
      _
    // Predicated region
    $region10: #{tpu_custom_call.1} parent=1 // pred_check
      _
    $region11: #{tpu_custom_call.1} parent=1 // pred_check_branch
      %40 = sbr.rel (0) target = $region13
    $region12: #{tpu_custom_call.1} parent=1 // pred_region
      %42 = vsyncadd [#allocation6], 0
      %s43 = sshll.u32 %s2, 4
      %s44 = int_to_ptr.hbm [resolvable:$true] %s43
      %s45 = sshll.u32 [#allocation7], 4
      %s46 = int_to_ptr.vmem [resolvable:$true] %s45
      %51 = dma.hbm_to_vmem [thread:$0]  %s44, 1024, %s46, [#allocation6], 128, 128, 8
    $region13: #{tpu_custom_call.1} parent=1 // pred_fallthru
      _
    // Predicated region
    $region14: #{tpu_custom_call.1} parent=1 // pred_check
      _
    $region15: #{tpu_custom_call.1} parent=1 // pred_check_branch
      %53 = sbr.rel (0) target = $region17
    $region16: #{tpu_custom_call.1} parent=1 // pred_region
      %55 = vsyncadd [#allocation9], 0
      %s56 = sshll.u32 %s3, 4
      %s57 = int_to_ptr.hbm [resolvable:$true] %s56
      %s58 = sshll.u32 [#allocation8], 4
      %s59 = int_to_ptr.vmem [resolvable:$true] %s58
      %64 = dma.hbm_to_vmem [thread:$0]  %s57, 4096, %s59, [#allocation9], 128, 128, 8
    $region17: #{tpu_custom_call.1} parent=1 // pred_fallthru
      _
    // Predicated region
    $region18: #{tpu_custom_call.1} parent=1 // pred_check
      _
    $region19: #{tpu_custom_call.1} parent=1 // pred_check_branch
      %66 = sbr.rel (0) target = $region21
    $region20: #{tpu_custom_call.1} parent=1 // pred_region
      %68 = dma.done [#allocation3], 4096
    $region21: #{tpu_custom_call.1} parent=1 // pred_fallthru
      _
    // Predicated region
    $region22: #{tpu_custom_call.1} parent=1 // pred_check
      _
    $region23: #{tpu_custom_call.1} parent=1 // pred_check_branch
      %70 = sbr.rel (0) target = $region25
    $region24: #{tpu_custom_call.1} parent=1 // pred_region
      %72 = dma.done [#allocation6], 8192
    $region25: #{tpu_custom_call.1} parent=1 // pred_fallthru
      _
    // Predicated region
    $region26: #{tpu_custom_call.1} parent=1 // pred_check
      _
    $region27: #{tpu_custom_call.1} parent=1 // pred_check_branch
      %74 = sbr.rel (0) target = $region29
    $region28: #{tpu_custom_call.1} parent=1 // pred_region
      %76 = dma.done [#allocation6], 1024
    $region29: #{tpu_custom_call.1} parent=1 // pred_fallthru
      _
    // Predicated region
    $region30: #{tpu_custom_call.1} parent=1 // pred_check
      _
    $region31: #{tpu_custom_call.1} parent=1 // pred_check_branch
      %78 = sbr.rel (0) target = $region33
    $region32: #{tpu_custom_call.1} parent=1 // pred_region
      %80 = dma.done [#allocation9], 4096
    $region33: #{tpu_custom_call.1} parent=1 // pred_fallthru
      _
    %v81 = vld [vmem:[#allocation2] sm:$0xff]
    %v82 = vld [vmem:[#allocation2 + $0x8] sm:$0xff]
    %v83 = vld [vmem:[#allocation2 + $0x10] sm:$0xff]
    %v84 = vld [vmem:[#allocation2 + $0x18] sm:$0xff]
    %v85 = vld [vmem:[#allocation2 + $0x20] sm:$0xff]
    %v86 = vld [vmem:[#allocation2 + $0x28] sm:$0xff]
    %v87 = vld [vmem:[#allocation2 + $0x30] sm:$0xff]
    %v88 = vld [vmem:[#allocation2 + $0x38] sm:$0xff]
    %v89 = vld [vmem:[#allocation2 + $0x40] sm:$0xff]
    %v90 = vld [vmem:[#allocation2 + $0x48] sm:$0xff]
    %v91 = vld [vmem:[#allocation2 + $0x50] sm:$0xff]
    %v92 = vld [vmem:[#allocation2 + $0x58] sm:$0xff]
    %v93 = vld [vmem:[#allocation2 + $0x60] sm:$0xff]
    %v94 = vld [vmem:[#allocation2 + $0x68] sm:$0xff]
    %v95 = vld [vmem:[#allocation2 + $0x70] sm:$0xff]
    %v96 = vld [vmem:[#allocation2 + $0x78] sm:$0xff]
    %v97 = vld [vmem:[#allocation2 + $0x80] sm:$0xff]
    %v98 = vld [vmem:[#allocation2 + $0x88] sm:$0xff]
    %v99 = vld [vmem:[#allocation2 + $0x90] sm:$0xff]
    %v100 = vld [vmem:[#allocation2 + $0x98] sm:$0xff]
    %v101 = vld [vmem:[#allocation2 + $0xa0] sm:$0xff]
    %v102 = vld [vmem:[#allocation2 + $0xa8] sm:$0xff]
    %v103 = vld [vmem:[#allocation2 + $0xb0] sm:$0xff]
    %v104 = vld [vmem:[#allocation2 + $0xb8] sm:$0xff]
    %v105 = vld [vmem:[#allocation2 + $0xc0] sm:$0xff]
    %v106 = vld [vmem:[#allocation2 + $0xc8] sm:$0xff]
    %v107 = vld [vmem:[#allocation2 + $0xd0] sm:$0xff]
    %v108 = vld [vmem:[#allocation2 + $0xd8] sm:$0xff]
    %v109 = vld [vmem:[#allocation2 + $0xe0] sm:$0xff]
    %v110 = vld [vmem:[#allocation2 + $0xe8] sm:$0xff]
    %v111 = vld [vmem:[#allocation2 + $0xf0] sm:$0xff]
    %v112 = vld [vmem:[#allocation2 + $0xf8] sm:$0xff]
    %v113 = vld [vmem:[#allocation5] sm:$0xff]
    %v114 = vld [vmem:[#allocation5 + $0x8] sm:$0xff]
    %v115 = vld [vmem:[#allocation5 + $0x10] sm:$0xff]
    %v116 = vld [vmem:[#allocation5 + $0x18] sm:$0xff]
    %v117 = vld [vmem:[#allocation5 + $0x20] sm:$0xff]
    %v118 = vld [vmem:[#allocation5 + $0x28] sm:$0xff]
    %v119 = vld [vmem:[#allocation5 + $0x30] sm:$0xff]
    %v120 = vld [vmem:[#allocation5 + $0x38] sm:$0xff]
    %v121 = vld [vmem:[#allocation5 + $0x40] sm:$0xff]
    %v122 = vld [vmem:[#allocation5 + $0x48] sm:$0xff]
    %v123 = vld [vmem:[#allocation5 + $0x50] sm:$0xff]
    %v124 = vld [vmem:[#allocation5 + $0x58] sm:$0xff]
    %v125 = vld [vmem:[#allocation5 + $0x60] sm:$0xff]
    %v126 = vld [vmem:[#allocation5 + $0x68] sm:$0xff]
    %v127 = vld [vmem:[#allocation5 + $0x70] sm:$0xff]
    %v128 = vld [vmem:[#allocation5 + $0x78] sm:$0xff]
    %v129 = vld [vmem:[#allocation5 + $0x80] sm:$0xff]
    %v130 = vld [vmem:[#allocation5 + $0x88] sm:$0xff]
    %v131 = vld [vmem:[#allocation5 + $0x90] sm:$0xff]
    %v132 = vld [vmem:[#allocation5 + $0x98] sm:$0xff]
    %v133 = vld [vmem:[#allocation5 + $0xa0] sm:$0xff]
    %v134 = vld [vmem:[#allocation5 + $0xa8] sm:$0xff]
    %v135 = vld [vmem:[#allocation5 + $0xb0] sm:$0xff]
    %v136 = vld [vmem:[#allocation5 + $0xb8] sm:$0xff]
    %v137 = vld [vmem:[#allocation5 + $0xc0] sm:$0xff]
    %v138 = vld [vmem:[#allocation5 + $0xc8] sm:$0xff]
    %v139 = vld [vmem:[#allocation5 + $0xd0] sm:$0xff]
    %v140 = vld [vmem:[#allocation5 + $0xd8] sm:$0xff]
    %v141 = vld [vmem:[#allocation5 + $0xe0] sm:$0xff]
    %v142 = vld [vmem:[#allocation5 + $0xe8] sm:$0xff]
    %v143 = vld [vmem:[#allocation5 + $0xf0] sm:$0xff]
    %v144 = vld [vmem:[#allocation5 + $0xf8] sm:$0xff]
    %v145 = vld [vmem:[#allocation5 + $0x100] sm:$0xff]
    %v146 = vld [vmem:[#allocation5 + $0x108] sm:$0xff]
    %v147 = vld [vmem:[#allocation5 + $0x110] sm:$0xff]
    %v148 = vld [vmem:[#allocation5 + $0x118] sm:$0xff]
    %v149 = vld [vmem:[#allocation5 + $0x120] sm:$0xff]
    %v150 = vld [vmem:[#allocation5 + $0x128] sm:$0xff]
    %v151 = vld [vmem:[#allocation5 + $0x130] sm:$0xff]
    %v152 = vld [vmem:[#allocation5 + $0x138] sm:$0xff]
    %v153 = vld [vmem:[#allocation5 + $0x140] sm:$0xff]
    %v154 = vld [vmem:[#allocation5 + $0x148] sm:$0xff]
    %v155 = vld [vmem:[#allocation5 + $0x150] sm:$0xff]
    %v156 = vld [vmem:[#allocation5 + $0x158] sm:$0xff]
    %v157 = vld [vmem:[#allocation5 + $0x160] sm:$0xff]
    %v158 = vld [vmem:[#allocation5 + $0x168] sm:$0xff]
    %v159 = vld [vmem:[#allocation5 + $0x170] sm:$0xff]
    %v160 = vld [vmem:[#allocation5 + $0x178] sm:$0xff]
    %v161 = vld [vmem:[#allocation5 + $0x180] sm:$0xff]
    %v162 = vld [vmem:[#allocation5 + $0x188] sm:$0xff]
    %v163 = vld [vmem:[#allocation5 + $0x190] sm:$0xff]
    %v164 = vld [vmem:[#allocation5 + $0x198] sm:$0xff]
    %v165 = vld [vmem:[#allocation5 + $0x1a0] sm:$0xff]
    %v166 = vld [vmem:[#allocation5 + $0x1a8] sm:$0xff]
    %v167 = vld [vmem:[#allocation5 + $0x1b0] sm:$0xff]
    %v168 = vld [vmem:[#allocation5 + $0x1b8] sm:$0xff]
    %v169 = vld [vmem:[#allocation5 + $0x1c0] sm:$0xff]
    %v170 = vld [vmem:[#allocation5 + $0x1c8] sm:$0xff]
    %v171 = vld [vmem:[#allocation5 + $0x1d0] sm:$0xff]
    %v172 = vld [vmem:[#allocation5 + $0x1d8] sm:$0xff]
    %v173 = vld [vmem:[#allocation5 + $0x1e0] sm:$0xff]
    %v174 = vld [vmem:[#allocation5 + $0x1e8] sm:$0xff]
    %v175 = vld [vmem:[#allocation5 + $0x1f0] sm:$0xff]
    %v176 = vld [vmem:[#allocation5 + $0x1f8] sm:$0xff]
    %v177 = vld [vmem:[#allocation7] sm:$0xff]
    %v178 = vld [vmem:[#allocation7 + $0x8] sm:$0xff]
    %v179 = vld [vmem:[#allocation7 + $0x10] sm:$0xff]
    %v180 = vld [vmem:[#allocation7 + $0x18] sm:$0xff]
    %v181 = vld [vmem:[#allocation7 + $0x20] sm:$0xff]
    %v182 = vld [vmem:[#allocation7 + $0x28] sm:$0xff]
    %v183 = vld [vmem:[#allocation7 + $0x30] sm:$0xff]
    %v184 = vld [vmem:[#allocation7 + $0x38] sm:$0xff]
    %v185 = vld [vmem:[#allocation8] sm:$0xff]
    %v186 = vld [vmem:[#allocation8 + $0x8] sm:$0xff]
    %v187 = vld [vmem:[#allocation8 + $0x10] sm:$0xff]
    %v188 = vld [vmem:[#allocation8 + $0x18] sm:$0xff]
    %v189 = vld [vmem:[#allocation8 + $0x20] sm:$0xff]
    %v190 = vld [vmem:[#allocation8 + $0x28] sm:$0xff]
    %v191 = vld [vmem:[#allocation8 + $0x30] sm:$0xff]
    %v192 = vld [vmem:[#allocation8 + $0x38] sm:$0xff]
    %v193 = vld [vmem:[#allocation8 + $0x40] sm:$0xff]
    %v194 = vld [vmem:[#allocation8 + $0x48] sm:$0xff]
    %v195 = vld [vmem:[#allocation8 + $0x50] sm:$0xff]
    %v196 = vld [vmem:[#allocation8 + $0x58] sm:$0xff]
    %v197 = vld [vmem:[#allocation8 + $0x60] sm:$0xff]
    %v198 = vld [vmem:[#allocation8 + $0x68] sm:$0xff]
    %v199 = vld [vmem:[#allocation8 + $0x70] sm:$0xff]
    %v200 = vld [vmem:[#allocation8 + $0x78] sm:$0xff]
    %v201 = vld [vmem:[#allocation8 + $0x80] sm:$0xff]
    %v202 = vld [vmem:[#allocation8 + $0x88] sm:$0xff]
    %v203 = vld [vmem:[#allocation8 + $0x90] sm:$0xff]
    %v204 = vld [vmem:[#allocation8 + $0x98] sm:$0xff]
    %v205 = vld [vmem:[#allocation8 + $0xa0] sm:$0xff]
    %v206 = vld [vmem:[#allocation8 + $0xa8] sm:$0xff]
    %v207 = vld [vmem:[#allocation8 + $0xb0] sm:$0xff]
    %v208 = vld [vmem:[#allocation8 + $0xb8] sm:$0xff]
    %v209 = vld [vmem:[#allocation8 + $0xc0] sm:$0xff]
    %v210 = vld [vmem:[#allocation8 + $0xc8] sm:$0xff]
    %v211 = vld [vmem:[#allocation8 + $0xd0] sm:$0xff]
    %v212 = vld [vmem:[#allocation8 + $0xd8] sm:$0xff]
    %v213 = vld [vmem:[#allocation8 + $0xe0] sm:$0xff]
    %v214 = vld [vmem:[#allocation8 + $0xe8] sm:$0xff]
    %v215 = vld [vmem:[#allocation8 + $0xf0] sm:$0xff]
    %v216 = vld [vmem:[#allocation8 + $0xf8] sm:$0xff]
    %217 = vmatpush.xpose.msra.mxu0 %v128
    %218 = vmatpush.xpose.msra.mxu0 %v127
    %219 = vmatpush.xpose.msra.mxu0 %v126
    %220 = vmatpush.xpose.msra.mxu0 %v125
    %221 = vmatpush.xpose.msra.mxu0 %v124
    %222 = vmatpush.xpose.msra.mxu0 %v123
    %223 = vmatpush.xpose.msra.mxu0 %v122
    %224 = vmatpush.xpose.msra.mxu0 %v121
    %225 = vmatpush.xpose.msra.mxu0 %v120
    %226 = vmatpush.xpose.msra.mxu0 %v119
    %227 = vmatpush.xpose.msra.mxu0 %v118
    %228 = vmatpush.xpose.msra.mxu0 %v117
    %229 = vmatpush.xpose.msra.mxu0 %v116
    %230 = vmatpush.xpose.msra.mxu0 %v115
    %231 = vmatpush.xpose.msra.mxu0 %v114
    %232 = vmatpush.xpose.msra.mxu0 %v113
    %233 = vmatmul.f32.gmra.mxu0 %v81
    %v234 = vpop.f32.mrf.mxu0
    %v235 = vadd.f32 0.0, %v234
    %236 = vmatmul.f32.gmra.mxu0 %v82
    %v237 = vpop.f32.mrf.mxu0
    %v238 = vadd.f32 0.0, %v237
    %239 = vmatmul.f32.gmra.mxu0 %v83
    %v240 = vpop.f32.mrf.mxu0
    %v241 = vadd.f32 0.0, %v240
    %242 = vmatmul.f32.gmra.mxu0 %v84
    %v243 = vpop.f32.mrf.mxu0
    %v244 = vadd.f32 0.0, %v243
    %245 = vmatmul.f32.gmra.mxu0 %v85
    %v246 = vpop.f32.mrf.mxu0
    %v247 = vadd.f32 0.0, %v246
    %248 = vmatmul.f32.gmra.mxu0 %v86
    %v249 = vpop.f32.mrf.mxu0
    %v250 = vadd.f32 0.0, %v249
    %251 = vmatmul.f32.gmra.mxu0 %v87
    %v252 = vpop.f32.mrf.mxu0
    %v253 = vadd.f32 0.0, %v252
    %254 = vmatmul.f32.gmra.mxu0 %v88
    %v255 = vpop.f32.mrf.mxu0
    %v256 = vadd.f32 0.0, %v255
    %257 = vdwg.mxu0
    %258 = vmatpush.xpose.msra.mxu0 %v144
    %259 = vmatpush.xpose.msra.mxu0 %v143
    %260 = vmatpush.xpose.msra.mxu0 %v142
    %261 = vmatpush.xpose.msra.mxu0 %v141
    %262 = vmatpush.xpose.msra.mxu0 %v140
    %263 = vmatpush.xpose.msra.mxu0 %v139
    %264 = vmatpush.xpose.msra.mxu0 %v138
    %265 = vmatpush.xpose.msra.mxu0 %v137
    %266 = vmatpush.xpose.msra.mxu0 %v136
    %267 = vmatpush.xpose.msra.mxu0 %v135
    %268 = vmatpush.xpose.msra.mxu0 %v134
    %269 = vmatpush.xpose.msra.mxu0 %v133
    %270 = vmatpush.xpose.msra.mxu0 %v132
    %271 = vmatpush.xpose.msra.mxu0 %v131
    %272 = vmatpush.xpose.msra.mxu0 %v130
    %273 = vmatpush.xpose.msra.mxu0 %v129
    %274 = vmatmul.f32.gmra.mxu0 %v89
    %v275 = vpop.f32.mrf.mxu0
    %v276 = vadd.f32 0.0, %v275
    %277 = vmatmul.f32.gmra.mxu0 %v90
    %v278 = vpop.f32.mrf.mxu0
    %v279 = vadd.f32 0.0, %v278
    %280 = vmatmul.f32.gmra.mxu0 %v91
    %v281 = vpop.f32.mrf.mxu0
    %v282 = vadd.f32 0.0, %v281
    %283 = vmatmul.f32.gmra.mxu0 %v92
    %v284 = vpop.f32.mrf.mxu0
    %v285 = vadd.f32 0.0, %v284
    %286 = vmatmul.f32.gmra.mxu0 %v93
    %v287 = vpop.f32.mrf.mxu0
    %v288 = vadd.f32 0.0, %v287
    %289 = vmatmul.f32.gmra.mxu0 %v94
    %v290 = vpop.f32.mrf.mxu0
    %v291 = vadd.f32 0.0, %v290
    %292 = vmatmul.f32.gmra.mxu0 %v95
    %v293 = vpop.f32.mrf.mxu0
    %v294 = vadd.f32 0.0, %v293
    %295 = vmatmul.f32.gmra.mxu0 %v96
    %v296 = vpop.f32.mrf.mxu0
    %v297 = vadd.f32 0.0, %v296
    %298 = vdwg.mxu0
    %299 = vmatpush.xpose.msra.mxu0 %v160
    %300 = vmatpush.xpose.msra.mxu0 %v159
    %301 = vmatpush.xpose.msra.mxu0 %v158
    %302 = vmatpush.xpose.msra.mxu0 %v157
    %303 = vmatpush.xpose.msra.mxu0 %v156
    %304 = vmatpush.xpose.msra.mxu0 %v155
    %305 = vmatpush.xpose.msra.mxu0 %v154
    %306 = vmatpush.xpose.msra.mxu0 %v153
    %307 = vmatpush.xpose.msra.mxu0 %v152
    %308 = vmatpush.xpose.msra.mxu0 %v151
    %309 = vmatpush.xpose.msra.mxu0 %v150
    %310 = vmatpush.xpose.msra.mxu0 %v149
    %311 = vmatpush.xpose.msra.mxu0 %v148
    %312 = vmatpush.xpose.msra.mxu0 %v147
    %313 = vmatpush.xpose.msra.mxu0 %v146
    %314 = vmatpush.xpose.msra.mxu0 %v145
    %315 = vmatmul.f32.gmra.mxu0 %v97
    %v316 = vpop.f32.mrf.mxu0
    %v317 = vadd.f32 0.0, %v316
    %318 = vmatmul.f32.gmra.mxu0 %v98
    %v319 = vpop.f32.mrf.mxu0
    %v320 = vadd.f32 0.0, %v319
    %321 = vmatmul.f32.gmra.mxu0 %v99
    %v322 = vpop.f32.mrf.mxu0
    %v323 = vadd.f32 0.0, %v322
    %324 = vmatmul.f32.gmra.mxu0 %v100
    %v325 = vpop.f32.mrf.mxu0
    %v326 = vadd.f32 0.0, %v325
    %327 = vmatmul.f32.gmra.mxu0 %v101
    %v328 = vpop.f32.mrf.mxu0
    %v329 = vadd.f32 0.0, %v328
    %330 = vmatmul.f32.gmra.mxu0 %v102
    %v331 = vpop.f32.mrf.mxu0
    %v332 = vadd.f32 0.0, %v331
    %333 = vmatmul.f32.gmra.mxu0 %v103
    %v334 = vpop.f32.mrf.mxu0
    %v335 = vadd.f32 0.0, %v334
    %336 = vmatmul.f32.gmra.mxu0 %v104
    %v337 = vpop.f32.mrf.mxu0
    %v338 = vadd.f32 0.0, %v337
    %339 = vdwg.mxu0
    %340 = vmatpush.xpose.msra.mxu0 %v176
    %341 = vmatpush.xpose.msra.mxu0 %v175
    %342 = vmatpush.xpose.msra.mxu0 %v174
    %343 = vmatpush.xpose.msra.mxu0 %v173
    %344 = vmatpush.xpose.msra.mxu0 %v172
    %345 = vmatpush.xpose.msra.mxu0 %v171
    %346 = vmatpush.xpose.msra.mxu0 %v170
    %347 = vmatpush.xpose.msra.mxu0 %v169
    %348 = vmatpush.xpose.msra.mxu0 %v168
    %349 = vmatpush.xpose.msra.mxu0 %v167
    %350 = vmatpush.xpose.msra.mxu0 %v166
    %351 = vmatpush.xpose.msra.mxu0 %v165
    %352 = vmatpush.xpose.msra.mxu0 %v164
    %353 = vmatpush.xpose.msra.mxu0 %v163
    %354 = vmatpush.xpose.msra.mxu0 %v162
    %355 = vmatpush.xpose.msra.mxu0 %v161
    %356 = vmatmul.f32.gmra.mxu0 %v105
    %v357 = vpop.f32.mrf.mxu0
    %v358 = vadd.f32 0.0, %v357
    %359 = vmatmul.f32.gmra.mxu0 %v106
    %v360 = vpop.f32.mrf.mxu0
    %v361 = vadd.f32 0.0, %v360
    %362 = vmatmul.f32.gmra.mxu0 %v107
    %v363 = vpop.f32.mrf.mxu0
    %v364 = vadd.f32 0.0, %v363
    %365 = vmatmul.f32.gmra.mxu0 %v108
    %v366 = vpop.f32.mrf.mxu0
    %v367 = vadd.f32 0.0, %v366
    %368 = vmatmul.f32.gmra.mxu0 %v109
    %v369 = vpop.f32.mrf.mxu0
    %v370 = vadd.f32 0.0, %v369
    %371 = vmatmul.f32.gmra.mxu0 %v110
    %v372 = vpop.f32.mrf.mxu0
    %v373 = vadd.f32 0.0, %v372
    %374 = vmatmul.f32.gmra.mxu0 %v111
    %v375 = vpop.f32.mrf.mxu0
    %v376 = vadd.f32 0.0, %v375
    %377 = vmatmul.f32.gmra.mxu0 %v112
    %v378 = vpop.f32.mrf.mxu0
    %v379 = vadd.f32 0.0, %v378
    %380 = vdwg.mxu0
    %v381 = vmul.f32 %v235, %v177
    %v382 = vmul.f32 %v238, %v178
    %v383 = vmul.f32 %v241, %v179
    %v384 = vmul.f32 %v244, %v180
    %v385 = vmul.f32 %v247, %v181
    %v386 = vmul.f32 %v250, %v182
    %v387 = vmul.f32 %v253, %v183
    %v388 = vmul.f32 %v256, %v184
    %v389 = vmul.f32 %v276, %v177
    %v390 = vmul.f32 %v279, %v178
    %v391 = vmul.f32 %v282, %v179
    %v392 = vmul.f32 %v285, %v180
    %v393 = vmul.f32 %v288, %v181
    %v394 = vmul.f32 %v291, %v182
    %v395 = vmul.f32 %v294, %v183
    %v396 = vmul.f32 %v297, %v184
    %v397 = vmul.f32 %v317, %v177
    %v398 = vmul.f32 %v320, %v178
    %v399 = vmul.f32 %v323, %v179
    %v400 = vmul.f32 %v326, %v180
    %v401 = vmul.f32 %v329, %v181
    %v402 = vmul.f32 %v332, %v182
    %v403 = vmul.f32 %v335, %v183
    %v404 = vmul.f32 %v338, %v184
    %v405 = vmul.f32 %v358, %v177
    %v406 = vmul.f32 %v361, %v178
    %v407 = vmul.f32 %v364, %v179
    %v408 = vmul.f32 %v367, %v180
    %v409 = vmul.f32 %v370, %v181
    %v410 = vmul.f32 %v373, %v182
    %v411 = vmul.f32 %v376, %v183
    %v412 = vmul.f32 %v379, %v184
    %413 = vmax.xlane.f32.xlu0 %v381
    %v414 = vpop.xlane.xlu0 %413
    %415 = vmax.xlane.f32.xlu0 %v382
    %v416 = vpop.xlane.xlu0 %415
    %417 = vmax.xlane.f32.xlu0 %v383
    %v418 = vpop.xlane.xlu0 %417
    %419 = vmax.xlane.f32.xlu0 %v384
    %v420 = vpop.xlane.xlu0 %419
    %421 = vmax.xlane.f32.xlu0 %v385
    %v422 = vpop.xlane.xlu0 %421
    %423 = vmax.xlane.f32.xlu0 %v386
    %v424 = vpop.xlane.xlu0 %423
    %425 = vmax.xlane.f32.xlu0 %v387
    %v426 = vpop.xlane.xlu0 %425
    %427 = vmax.xlane.f32.xlu0 %v388
    %v428 = vpop.xlane.xlu0 %427
    %429 = vmax.xlane.f32.xlu0 %v389
    %v430 = vpop.xlane.xlu0 %429
    %431 = vmax.xlane.f32.xlu0 %v390
    %v432 = vpop.xlane.xlu0 %431
    %433 = vmax.xlane.f32.xlu0 %v391
    %v434 = vpop.xlane.xlu0 %433
    %435 = vmax.xlane.f32.xlu0 %v392
    %v436 = vpop.xlane.xlu0 %435
    %437 = vmax.xlane.f32.xlu0 %v393
    %v438 = vpop.xlane.xlu0 %437
    %439 = vmax.xlane.f32.xlu0 %v394
    %v440 = vpop.xlane.xlu0 %439
    %441 = vmax.xlane.f32.xlu0 %v395
    %v442 = vpop.xlane.xlu0 %441
    %443 = vmax.xlane.f32.xlu0 %v396
    %v444 = vpop.xlane.xlu0 %443
    %445 = vmax.xlane.f32.xlu0 %v397
    %v446 = vpop.xlane.xlu0 %445
    %447 = vmax.xlane.f32.xlu0 %v398
    %v448 = vpop.xlane.xlu0 %447
    %449 = vmax.xlane.f32.xlu0 %v399
    %v450 = vpop.xlane.xlu0 %449
    %451 = vmax.xlane.f32.xlu0 %v400
    %v452 = vpop.xlane.xlu0 %451
    %453 = vmax.xlane.f32.xlu0 %v401
    %v454 = vpop.xlane.xlu0 %453
    %455 = vmax.xlane.f32.xlu0 %v402
    %v456 = vpop.xlane.xlu0 %455
    %457 = vmax.xlane.f32.xlu0 %v403
    %v458 = vpop.xlane.xlu0 %457
    %459 = vmax.xlane.f32.xlu0 %v404
    %v460 = vpop.xlane.xlu0 %459
    %461 = vmax.xlane.f32.xlu0 %v405
    %v462 = vpop.xlane.xlu0 %461
    %463 = vmax.xlane.f32.xlu0 %v406
    %v464 = vpop.xlane.xlu0 %463
    %465 = vmax.xlane.f32.xlu0 %v407
    %v466 = vpop.xlane.xlu0 %465
    %467 = vmax.xlane.f32.xlu0 %v408
    %v468 = vpop.xlane.xlu0 %467
    %469 = vmax.xlane.f32.xlu0 %v409
    %v470 = vpop.xlane.xlu0 %469
    %471 = vmax.xlane.f32.xlu0 %v410
    %v472 = vpop.xlane.xlu0 %471
    %473 = vmax.xlane.f32.xlu0 %v411
    %v474 = vpop.xlane.xlu0 %473
    %475 = vmax.xlane.f32.xlu0 %v412
    %v476 = vpop.xlane.xlu0 %475
    %v477 = vsub.f32 %v381, %v414
    %v478 = vsub.f32 %v382, %v416
    %v479 = vsub.f32 %v383, %v418
    %v480 = vsub.f32 %v384, %v420
    %v481 = vsub.f32 %v385, %v422
    %v482 = vsub.f32 %v386, %v424
    %v483 = vsub.f32 %v387, %v426
    %v484 = vsub.f32 %v388, %v428
    %v485 = vsub.f32 %v389, %v430
    %v486 = vsub.f32 %v390, %v432
    %v487 = vsub.f32 %v391, %v434
    %v488 = vsub.f32 %v392, %v436
    %v489 = vsub.f32 %v393, %v438
    %v490 = vsub.f32 %v394, %v440
    %v491 = vsub.f32 %v395, %v442
    %v492 = vsub.f32 %v396, %v444
    %v493 = vsub.f32 %v397, %v446
    %v494 = vsub.f32 %v398, %v448
    %v495 = vsub.f32 %v399, %v450
    %v496 = vsub.f32 %v400, %v452
    %v497 = vsub.f32 %v401, %v454
    %v498 = vsub.f32 %v402, %v456
    %v499 = vsub.f32 %v403, %v458
    %v500 = vsub.f32 %v404, %v460
    %v501 = vsub.f32 %v405, %v462
    %v502 = vsub.f32 %v406, %v464
    %v503 = vsub.f32 %v407, %v466
    %v504 = vsub.f32 %v408, %v468
    %v505 = vsub.f32 %v409, %v470
    %v506 = vsub.f32 %v410, %v472
    %v507 = vsub.f32 %v411, %v474
    %v508 = vsub.f32 %v412, %v476
    %v509 = vmul.f32 %v477, 1.442695
    %v510 = vpow.pop %v509
    %v511 = vmul.f32 %v478, 1.442695
    %v512 = vpow.pop %v511
    %v513 = vmul.f32 %v479, 1.442695
    %v514 = vpow.pop %v513
    %v515 = vmul.f32 %v480, 1.442695
    %v516 = vpow.pop %v515
    %v517 = vmul.f32 %v481, 1.442695
    %v518 = vpow.pop %v517
    %v519 = vmul.f32 %v482, 1.442695
    %v520 = vpow.pop %v519
    %v521 = vmul.f32 %v483, 1.442695
    %v522 = vpow.pop %v521
    %v523 = vmul.f32 %v484, 1.442695
    %v524 = vpow.pop %v523
    %v525 = vmul.f32 %v485, 1.442695
    %v526 = vpow.pop %v525
    %v527 = vmul.f32 %v486, 1.442695
    %v528 = vpow.pop %v527
    %v529 = vmul.f32 %v487, 1.442695
    %v530 = vpow.pop %v529
    %v531 = vmul.f32 %v488, 1.442695
    %v532 = vpow.pop %v531
    %v533 = vmul.f32 %v489, 1.442695
    %v534 = vpow.pop %v533
    %v535 = vmul.f32 %v490, 1.442695
    %v536 = vpow.pop %v535
    %v537 = vmul.f32 %v491, 1.442695
    %v538 = vpow.pop %v537
    %v539 = vmul.f32 %v492, 1.442695
    %v540 = vpow.pop %v539
    %v541 = vmul.f32 %v493, 1.442695
    %v542 = vpow.pop %v541
    %v543 = vmul.f32 %v494, 1.442695
    %v544 = vpow.pop %v543
    %v545 = vmul.f32 %v495, 1.442695
    %v546 = vpow.pop %v545
    %v547 = vmul.f32 %v496, 1.442695
    %v548 = vpow.pop %v547
    %v549 = vmul.f32 %v497, 1.442695
    %v550 = vpow.pop %v549
    %v551 = vmul.f32 %v498, 1.442695
    %v552 = vpow.pop %v551
    %v553 = vmul.f32 %v499, 1.442695
    %v554 = vpow.pop %v553
    %v555 = vmul.f32 %v500, 1.442695
    %v556 = vpow.pop %v555
    %v557 = vmul.f32 %v501, 1.442695
    %v558 = vpow.pop %v557
    %v559 = vmul.f32 %v502, 1.442695
    %v560 = vpow.pop %v559
    %v561 = vmul.f32 %v503, 1.442695
    %v562 = vpow.pop %v561
    %v563 = vmul.f32 %v504, 1.442695
    %v564 = vpow.pop %v563
    %v565 = vmul.f32 %v505, 1.442695
    %v566 = vpow.pop %v565
    %v567 = vmul.f32 %v506, 1.442695
    %v568 = vpow.pop %v567
    %v569 = vmul.f32 %v507, 1.442695
    %v570 = vpow.pop %v569
    %v571 = vmul.f32 %v508, 1.442695
    %v572 = vpow.pop %v571
    %573 = vadd.xlane.f32.xlu0 %v510
    %v574 = vpop.xlane.xlu0 %573
    %575 = vadd.xlane.f32.xlu0 %v512
    %v576 = vpop.xlane.xlu0 %575
    %577 = vadd.xlane.f32.xlu0 %v514
    %v578 = vpop.xlane.xlu0 %577
    %579 = vadd.xlane.f32.xlu0 %v516
    %v580 = vpop.xlane.xlu0 %579
    %581 = vadd.xlane.f32.xlu0 %v518
    %v582 = vpop.xlane.xlu0 %581
    %583 = vadd.xlane.f32.xlu0 %v520
    %v584 = vpop.xlane.xlu0 %583
    %585 = vadd.xlane.f32.xlu0 %v522
    %v586 = vpop.xlane.xlu0 %585
    %587 = vadd.xlane.f32.xlu0 %v524
    %v588 = vpop.xlane.xlu0 %587
    %589 = vadd.xlane.f32.xlu0 %v526
    %v590 = vpop.xlane.xlu0 %589
    %591 = vadd.xlane.f32.xlu0 %v528
    %v592 = vpop.xlane.xlu0 %591
    %593 = vadd.xlane.f32.xlu0 %v530
    %v594 = vpop.xlane.xlu0 %593
    %595 = vadd.xlane.f32.xlu0 %v532
    %v596 = vpop.xlane.xlu0 %595
    %597 = vadd.xlane.f32.xlu0 %v534
    %v598 = vpop.xlane.xlu0 %597
    %599 = vadd.xlane.f32.xlu0 %v536
    %v600 = vpop.xlane.xlu0 %599
    %601 = vadd.xlane.f32.xlu0 %v538
    %v602 = vpop.xlane.xlu0 %601
    %603 = vadd.xlane.f32.xlu0 %v540
    %v604 = vpop.xlane.xlu0 %603
    %605 = vadd.xlane.f32.xlu0 %v542
    %v606 = vpop.xlane.xlu0 %605
    %607 = vadd.xlane.f32.xlu0 %v544
    %v608 = vpop.xlane.xlu0 %607
    %609 = vadd.xlane.f32.xlu0 %v546
    %v610 = vpop.xlane.xlu0 %609
    %611 = vadd.xlane.f32.xlu0 %v548
    %v612 = vpop.xlane.xlu0 %611
    %613 = vadd.xlane.f32.xlu0 %v550
    %v614 = vpop.xlane.xlu0 %613
    %615 = vadd.xlane.f32.xlu0 %v552
    %v616 = vpop.xlane.xlu0 %615
    %617 = vadd.xlane.f32.xlu0 %v554
    %v618 = vpop.xlane.xlu0 %617
    %619 = vadd.xlane.f32.xlu0 %v556
    %v620 = vpop.xlane.xlu0 %619
    %621 = vadd.xlane.f32.xlu0 %v558
    %v622 = vpop.xlane.xlu0 %621
    %623 = vadd.xlane.f32.xlu0 %v560
    %v624 = vpop.xlane.xlu0 %623
    %625 = vadd.xlane.f32.xlu0 %v562
    %v626 = vpop.xlane.xlu0 %625
    %627 = vadd.xlane.f32.xlu0 %v564
    %v628 = vpop.xlane.xlu0 %627
    %629 = vadd.xlane.f32.xlu0 %v566
    %v630 = vpop.xlane.xlu0 %629
    %631 = vadd.xlane.f32.xlu0 %v568
    %v632 = vpop.xlane.xlu0 %631
    %633 = vadd.xlane.f32.xlu0 %v570
    %v634 = vpop.xlane.xlu0 %633
    %635 = vadd.xlane.f32.xlu0 %v572
    %v636 = vpop.xlane.xlu0 %635
    %v637 = vrcp.pop %v574
    %v638 = vmul.f32 %v574, %v637
    %v639 = vsub.f32 1.0, %v638
    %v640 = vmul.f32 %v637, %v639
    %v641 = vadd.f32 %v637, %v640
    %vm642 = vweird.f32 %v574
    %vm643 = vweird.f32 %v637
    %vm644 = vmor %vm642, %vm643
    %v645 = vsel %vm644, %v637, %v641
    %v646 = vand.u32 2147483647, %v574
    %vm647 = vcmp.eq.f32.partialorder %v646, 8.507059e+37
    %v648 = vand.u32 %v574, 2147483648
    %v649 = vor.u32 1.1754944e-38, %v648
    %v650 = vsel %vm647, %v649, %v645
    %v651 = vmul.f32 2.0, %v650
    %v652 = vrcp.pop %v576
    %v653 = vmul.f32 %v576, %v652
    %v654 = vsub.f32 1.0, %v653
    %v655 = vmul.f32 %v652, %v654
    %v656 = vadd.f32 %v652, %v655
    %vm657 = vweird.f32 %v576
    %vm658 = vweird.f32 %v652
    %vm659 = vmor %vm657, %vm658
    %v660 = vsel %vm659, %v652, %v656
    %v661 = vand.u32 2147483647, %v576
    %vm662 = vcmp.eq.f32.partialorder %v661, 8.507059e+37
    %v663 = vand.u32 %v576, 2147483648
    %v664 = vor.u32 1.1754944e-38, %v663
    %v665 = vsel %vm662, %v664, %v660
    %v666 = vmul.f32 2.0, %v665
    %v667 = vrcp.pop %v578
    %v668 = vmul.f32 %v578, %v667
    %v669 = vsub.f32 1.0, %v668
    %v670 = vmul.f32 %v667, %v669
    %v671 = vadd.f32 %v667, %v670
    %vm672 = vweird.f32 %v578
    %vm673 = vweird.f32 %v667
    %vm674 = vmor %vm672, %vm673
    %v675 = vsel %vm674, %v667, %v671
    %v676 = vand.u32 2147483647, %v578
    %vm677 = vcmp.eq.f32.partialorder %v676, 8.507059e+37
    %v678 = vand.u32 %v578, 2147483648
    %v679 = vor.u32 1.1754944e-38, %v678
    %v680 = vsel %vm677, %v679, %v675
    %v681 = vmul.f32 2.0, %v680
    %v682 = vrcp.pop %v580
    %v683 = vmul.f32 %v580, %v682
    %v684 = vsub.f32 1.0, %v683
    %v685 = vmul.f32 %v682, %v684
    %v686 = vadd.f32 %v682, %v685
    %vm687 = vweird.f32 %v580
    %vm688 = vweird.f32 %v682
    %vm689 = vmor %vm687, %vm688
    %v690 = vsel %vm689, %v682, %v686
    %v691 = vand.u32 2147483647, %v580
    %vm692 = vcmp.eq.f32.partialorder %v691, 8.507059e+37
    %v693 = vand.u32 %v580, 2147483648
    %v694 = vor.u32 1.1754944e-38, %v693
    %v695 = vsel %vm692, %v694, %v690
    %v696 = vmul.f32 2.0, %v695
    %v697 = vrcp.pop %v582
    %v698 = vmul.f32 %v582, %v697
    %v699 = vsub.f32 1.0, %v698
    %v700 = vmul.f32 %v697, %v699
    %v701 = vadd.f32 %v697, %v700
    %vm702 = vweird.f32 %v582
    %vm703 = vweird.f32 %v697
    %vm704 = vmor %vm702, %vm703
    %v705 = vsel %vm704, %v697, %v701
    %v706 = vand.u32 2147483647, %v582
    %vm707 = vcmp.eq.f32.partialorder %v706, 8.507059e+37
    %v708 = vand.u32 %v582, 2147483648
    %v709 = vor.u32 1.1754944e-38, %v708
    %v710 = vsel %vm707, %v709, %v705
    %v711 = vmul.f32 2.0, %v710
    %v712 = vrcp.pop %v584
    %v713 = vmul.f32 %v584, %v712
    %v714 = vsub.f32 1.0, %v713
    %v715 = vmul.f32 %v712, %v714
    %v716 = vadd.f32 %v712, %v715
    %vm717 = vweird.f32 %v584
    %vm718 = vweird.f32 %v712
    %vm719 = vmor %vm717, %vm718
    %v720 = vsel %vm719, %v712, %v716
    %v721 = vand.u32 2147483647, %v584
    %vm722 = vcmp.eq.f32.partialorder %v721, 8.507059e+37
    %v723 = vand.u32 %v584, 2147483648
    %v724 = vor.u32 1.1754944e-38, %v723
    %v725 = vsel %vm722, %v724, %v720
    %v726 = vmul.f32 2.0, %v725
    %v727 = vrcp.pop %v586
    %v728 = vmul.f32 %v586, %v727
    %v729 = vsub.f32 1.0, %v728
    %v730 = vmul.f32 %v727, %v729
    %v731 = vadd.f32 %v727, %v730
    %vm732 = vweird.f32 %v586
    %vm733 = vweird.f32 %v727
    %vm734 = vmor %vm732, %vm733
    %v735 = vsel %vm734, %v727, %v731
    %v736 = vand.u32 2147483647, %v586
    %vm737 = vcmp.eq.f32.partialorder %v736, 8.507059e+37
    %v738 = vand.u32 %v586, 2147483648
    %v739 = vor.u32 1.1754944e-38, %v738
    %v740 = vsel %vm737, %v739, %v735
    %v741 = vmul.f32 2.0, %v740
    %v742 = vrcp.pop %v588
    %v743 = vmul.f32 %v588, %v742
    %v744 = vsub.f32 1.0, %v743
    %v745 = vmul.f32 %v742, %v744
    %v746 = vadd.f32 %v742, %v745
    %vm747 = vweird.f32 %v588
    %vm748 = vweird.f32 %v742
    %vm749 = vmor %vm747, %vm748
    %v750 = vsel %vm749, %v742, %v746
    %v751 = vand.u32 2147483647, %v588
    %vm752 = vcmp.eq.f32.partialorder %v751, 8.507059e+37
    %v753 = vand.u32 %v588, 2147483648
    %v754 = vor.u32 1.1754944e-38, %v753
    %v755 = vsel %vm752, %v754, %v750
    %v756 = vmul.f32 2.0, %v755
    %v757 = vrcp.pop %v590
    %v758 = vmul.f32 %v590, %v757
    %v759 = vsub.f32 1.0, %v758
    %v760 = vmul.f32 %v757, %v759
    %v761 = vadd.f32 %v757, %v760
    %vm762 = vweird.f32 %v590
    %vm763 = vweird.f32 %v757
    %vm764 = vmor %vm762, %vm763
    %v765 = vsel %vm764, %v757, %v761
    %v766 = vand.u32 2147483647, %v590
    %vm767 = vcmp.eq.f32.partialorder %v766, 8.507059e+37
    %v768 = vand.u32 %v590, 2147483648
    %v769 = vor.u32 1.1754944e-38, %v768
    %v770 = vsel %vm767, %v769, %v765
    %v771 = vmul.f32 2.0, %v770
    %v772 = vrcp.pop %v592
    %v773 = vmul.f32 %v592, %v772
    %v774 = vsub.f32 1.0, %v773
    %v775 = vmul.f32 %v772, %v774
    %v776 = vadd.f32 %v772, %v775
    %vm777 = vweird.f32 %v592
    %vm778 = vweird.f32 %v772
    %vm779 = vmor %vm777, %vm778
    %v780 = vsel %vm779, %v772, %v776
    %v781 = vand.u32 2147483647, %v592
    %vm782 = vcmp.eq.f32.partialorder %v781, 8.507059e+37
    %v783 = vand.u32 %v592, 2147483648
    %v784 = vor.u32 1.1754944e-38, %v783
    %v785 = vsel %vm782, %v784, %v780
    %v786 = vmul.f32 2.0, %v785
    %v787 = vrcp.pop %v594
    %v788 = vmul.f32 %v594, %v787
    %v789 = vsub.f32 1.0, %v788
    %v790 = vmul.f32 %v787, %v789
    %v791 = vadd.f32 %v787, %v790
    %vm792 = vweird.f32 %v594
    %vm793 = vweird.f32 %v787
    %vm794 = vmor %vm792, %vm793
    %v795 = vsel %vm794, %v787, %v791
    %v796 = vand.u32 2147483647, %v594
    %vm797 = vcmp.eq.f32.partialorder %v796, 8.507059e+37
    %v798 = vand.u32 %v594, 2147483648
    %v799 = vor.u32 1.1754944e-38, %v798
    %v800 = vsel %vm797, %v799, %v795
    %v801 = vmul.f32 2.0, %v800
    %v802 = vrcp.pop %v596
    %v803 = vmul.f32 %v596, %v802
    %v804 = vsub.f32 1.0, %v803
    %v805 = vmul.f32 %v802, %v804
    %v806 = vadd.f32 %v802, %v805
    %vm807 = vweird.f32 %v596
    %vm808 = vweird.f32 %v802
    %vm809 = vmor %vm807, %vm808
    %v810 = vsel %vm809, %v802, %v806
    %v811 = vand.u32 2147483647, %v596
    %vm812 = vcmp.eq.f32.partialorder %v811, 8.507059e+37
    %v813 = vand.u32 %v596, 2147483648
    %v814 = vor.u32 1.1754944e-38, %v813
    %v815 = vsel %vm812, %v814, %v810
    %v816 = vmul.f32 2.0, %v815
    %v817 = vrcp.pop %v598
    %v818 = vmul.f32 %v598, %v817
    %v819 = vsub.f32 1.0, %v818
    %v820 = vmul.f32 %v817, %v819
    %v821 = vadd.f32 %v817, %v820
    %vm822 = vweird.f32 %v598
    %vm823 = vweird.f32 %v817
    %vm824 = vmor %vm822, %vm823
    %v825 = vsel %vm824, %v817, %v821
    %v826 = vand.u32 2147483647, %v598
    %vm827 = vcmp.eq.f32.partialorder %v826, 8.507059e+37
    %v828 = vand.u32 %v598, 2147483648
    %v829 = vor.u32 1.1754944e-38, %v828
    %v830 = vsel %vm827, %v829, %v825
    %v831 = vmul.f32 2.0, %v830
    %v832 = vrcp.pop %v600
    %v833 = vmul.f32 %v600, %v832
    %v834 = vsub.f32 1.0, %v833
    %v835 = vmul.f32 %v832, %v834
    %v836 = vadd.f32 %v832, %v835
    %vm837 = vweird.f32 %v600
    %vm838 = vweird.f32 %v832
    %vm839 = vmor %vm837, %vm838
    %v840 = vsel %vm839, %v832, %v836
    %v841 = vand.u32 2147483647, %v600
    %vm842 = vcmp.eq.f32.partialorder %v841, 8.507059e+37
    %v843 = vand.u32 %v600, 2147483648
    %v844 = vor.u32 1.1754944e-38, %v843
    %v845 = vsel %vm842, %v844, %v840
    %v846 = vmul.f32 2.0, %v845
    %v847 = vrcp.pop %v602
    %v848 = vmul.f32 %v602, %v847
    %v849 = vsub.f32 1.0, %v848
    %v850 = vmul.f32 %v847, %v849
    %v851 = vadd.f32 %v847, %v850
    %vm852 = vweird.f32 %v602
    %vm853 = vweird.f32 %v847
    %vm854 = vmor %vm852, %vm853
    %v855 = vsel %vm854, %v847, %v851
    %v856 = vand.u32 2147483647, %v602
    %vm857 = vcmp.eq.f32.partialorder %v856, 8.507059e+37
    %v858 = vand.u32 %v602, 2147483648
    %v859 = vor.u32 1.1754944e-38, %v858
    %v860 = vsel %vm857, %v859, %v855
    %v861 = vmul.f32 2.0, %v860
    %v862 = vrcp.pop %v604
    %v863 = vmul.f32 %v604, %v862
    %v864 = vsub.f32 1.0, %v863
    %v865 = vmul.f32 %v862, %v864
    %v866 = vadd.f32 %v862, %v865
    %vm867 = vweird.f32 %v604
    %vm868 = vweird.f32 %v862
    %vm869 = vmor %vm867, %vm868
    %v870 = vsel %vm869, %v862, %v866
    %v871 = vand.u32 2147483647, %v604
    %vm872 = vcmp.eq.f32.partialorder %v871, 8.507059e+37
    %v873 = vand.u32 %v604, 2147483648
    %v874 = vor.u32 1.1754944e-38, %v873
    %v875 = vsel %vm872, %v874, %v870
    %v876 = vmul.f32 2.0, %v875
    %v877 = vrcp.pop %v606
    %v878 = vmul.f32 %v606, %v877
    %v879 = vsub.f32 1.0, %v878
    %v880 = vmul.f32 %v877, %v879
    %v881 = vadd.f32 %v877, %v880
    %vm882 = vweird.f32 %v606
    %vm883 = vweird.f32 %v877
    %vm884 = vmor %vm882, %vm883
    %v885 = vsel %vm884, %v877, %v881
    %v886 = vand.u32 2147483647, %v606
    %vm887 = vcmp.eq.f32.partialorder %v886, 8.507059e+37
    %v888 = vand.u32 %v606, 2147483648
    %v889 = vor.u32 1.1754944e-38, %v888
    %v890 = vsel %vm887, %v889, %v885
    %v891 = vmul.f32 2.0, %v890
    %v892 = vrcp.pop %v608
    %v893 = vmul.f32 %v608, %v892
    %v894 = vsub.f32 1.0, %v893
    %v895 = vmul.f32 %v892, %v894
    %v896 = vadd.f32 %v892, %v895
    %vm897 = vweird.f32 %v608
    %vm898 = vweird.f32 %v892
    %vm899 = vmor %vm897, %vm898
    %v900 = vsel %vm899, %v892, %v896
    %v901 = vand.u32 2147483647, %v608
    %vm902 = vcmp.eq.f32.partialorder %v901, 8.507059e+37
    %v903 = vand.u32 %v608, 2147483648
    %v904 = vor.u32 1.1754944e-38, %v903
    %v905 = vsel %vm902, %v904, %v900
    %v906 = vmul.f32 2.0, %v905
    %v907 = vrcp.pop %v610
    %v908 = vmul.f32 %v610, %v907
    %v909 = vsub.f32 1.0, %v908
    %v910 = vmul.f32 %v907, %v909
    %v911 = vadd.f32 %v907, %v910
    %vm912 = vweird.f32 %v610
    %vm913 = vweird.f32 %v907
    %vm914 = vmor %vm912, %vm913
    %v915 = vsel %vm914, %v907, %v911
    %v916 = vand.u32 2147483647, %v610
    %vm917 = vcmp.eq.f32.partialorder %v916, 8.507059e+37
    %v918 = vand.u32 %v610, 2147483648
    %v919 = vor.u32 1.1754944e-38, %v918
    %v920 = vsel %vm917, %v919, %v915
    %v921 = vmul.f32 2.0, %v920
    %v922 = vrcp.pop %v612
    %v923 = vmul.f32 %v612, %v922
    %v924 = vsub.f32 1.0, %v923
    %v925 = vmul.f32 %v922, %v924
    %v926 = vadd.f32 %v922, %v925
    %vm927 = vweird.f32 %v612
    %vm928 = vweird.f32 %v922
    %vm929 = vmor %vm927, %vm928
    %v930 = vsel %vm929, %v922, %v926
    %v931 = vand.u32 2147483647, %v612
    %vm932 = vcmp.eq.f32.partialorder %v931, 8.507059e+37
    %v933 = vand.u32 %v612, 2147483648
    %v934 = vor.u32 1.1754944e-38, %v933
    %v935 = vsel %vm932, %v934, %v930
    %v936 = vmul.f32 2.0, %v935
    %v937 = vrcp.pop %v614
    %v938 = vmul.f32 %v614, %v937
    %v939 = vsub.f32 1.0, %v938
    %v940 = vmul.f32 %v937, %v939
    %v941 = vadd.f32 %v937, %v940
    %vm942 = vweird.f32 %v614
    %vm943 = vweird.f32 %v937
    %vm944 = vmor %vm942, %vm943
    %v945 = vsel %vm944, %v937, %v941
    %v946 = vand.u32 2147483647, %v614
    %vm947 = vcmp.eq.f32.partialorder %v946, 8.507059e+37
    %v948 = vand.u32 %v614, 2147483648
    %v949 = vor.u32 1.1754944e-38, %v948
    %v950 = vsel %vm947, %v949, %v945
    %v951 = vmul.f32 2.0, %v950
    %v952 = vrcp.pop %v616
    %v953 = vmul.f32 %v616, %v952
    %v954 = vsub.f32 1.0, %v953
    %v955 = vmul.f32 %v952, %v954
    %v956 = vadd.f32 %v952, %v955
    %vm957 = vweird.f32 %v616
    %vm958 = vweird.f32 %v952
    %vm959 = vmor %vm957, %vm958
    %v960 = vsel %vm959, %v952, %v956
    %v961 = vand.u32 2147483647, %v616
    %vm962 = vcmp.eq.f32.partialorder %v961, 8.507059e+37
    %v963 = vand.u32 %v616, 2147483648
    %v964 = vor.u32 1.1754944e-38, %v963
    %v965 = vsel %vm962, %v964, %v960
    %v966 = vmul.f32 2.0, %v965
    %v967 = vrcp.pop %v618
    %v968 = vmul.f32 %v618, %v967
    %v969 = vsub.f32 1.0, %v968
    %v970 = vmul.f32 %v967, %v969
    %v971 = vadd.f32 %v967, %v970
    %vm972 = vweird.f32 %v618
    %vm973 = vweird.f32 %v967
    %vm974 = vmor %vm972, %vm973
    %v975 = vsel %vm974, %v967, %v971
    %v976 = vand.u32 2147483647, %v618
    %vm977 = vcmp.eq.f32.partialorder %v976, 8.507059e+37
    %v978 = vand.u32 %v618, 2147483648
    %v979 = vor.u32 1.1754944e-38, %v978
    %v980 = vsel %vm977, %v979, %v975
    %v981 = vmul.f32 2.0, %v980
    %v982 = vrcp.pop %v620
    %v983 = vmul.f32 %v620, %v982
    %v984 = vsub.f32 1.0, %v983
    %v985 = vmul.f32 %v982, %v984
    %v986 = vadd.f32 %v982, %v985
    %vm987 = vweird.f32 %v620
    %vm988 = vweird.f32 %v982
    %vm989 = vmor %vm987, %vm988
    %v990 = vsel %vm989, %v982, %v986
    %v991 = vand.u32 2147483647, %v620
    %vm992 = vcmp.eq.f32.partialorder %v991, 8.507059e+37
    %v993 = vand.u32 %v620, 2147483648
    %v994 = vor.u32 1.1754944e-38, %v993
    %v995 = vsel %vm992, %v994, %v990
    %v996 = vmul.f32 2.0, %v995
    %v997 = vrcp.pop %v622
    %v998 = vmul.f32 %v622, %v997
    %v999 = vsub.f32 1.0, %v998
    %v1000 = vmul.f32 %v997, %v999
    %v1001 = vadd.f32 %v997, %v1000
    %vm1002 = vweird.f32 %v622
    %vm1003 = vweird.f32 %v997
    %vm1004 = vmor %vm1002, %vm1003
    %v1005 = vsel %vm1004, %v997, %v1001
    %v1006 = vand.u32 2147483647, %v622
    %vm1007 = vcmp.eq.f32.partialorder %v1006, 8.507059e+37
    %v1008 = vand.u32 %v622, 2147483648
    %v1009 = vor.u32 1.1754944e-38, %v1008
    %v1010 = vsel %vm1007, %v1009, %v1005
    %v1011 = vmul.f32 2.0, %v1010
    %v1012 = vrcp.pop %v624
    %v1013 = vmul.f32 %v624, %v1012
    %v1014 = vsub.f32 1.0, %v1013
    %v1015 = vmul.f32 %v1012, %v1014
    %v1016 = vadd.f32 %v1012, %v1015
    %vm1017 = vweird.f32 %v624
    %vm1018 = vweird.f32 %v1012
    %vm1019 = vmor %vm1017, %vm1018
    %v1020 = vsel %vm1019, %v1012, %v1016
    %v1021 = vand.u32 2147483647, %v624
    %vm1022 = vcmp.eq.f32.partialorder %v1021, 8.507059e+37
    %v1023 = vand.u32 %v624, 2147483648
    %v1024 = vor.u32 1.1754944e-38, %v1023
    %v1025 = vsel %vm1022, %v1024, %v1020
    %v1026 = vmul.f32 2.0, %v1025
    %v1027 = vrcp.pop %v626
    %v1028 = vmul.f32 %v626, %v1027
    %v1029 = vsub.f32 1.0, %v1028
    %v1030 = vmul.f32 %v1027, %v1029
    %v1031 = vadd.f32 %v1027, %v1030
    %vm1032 = vweird.f32 %v626
    %vm1033 = vweird.f32 %v1027
    %vm1034 = vmor %vm1032, %vm1033
    %v1035 = vsel %vm1034, %v1027, %v1031
    %v1036 = vand.u32 2147483647, %v626
    %vm1037 = vcmp.eq.f32.partialorder %v1036, 8.507059e+37
    %v1038 = vand.u32 %v626, 2147483648
    %v1039 = vor.u32 1.1754944e-38, %v1038
    %v1040 = vsel %vm1037, %v1039, %v1035
    %v1041 = vmul.f32 2.0, %v1040
    %v1042 = vrcp.pop %v628
    %v1043 = vmul.f32 %v628, %v1042
    %v1044 = vsub.f32 1.0, %v1043
    %v1045 = vmul.f32 %v1042, %v1044
    %v1046 = vadd.f32 %v1042, %v1045
    %vm1047 = vweird.f32 %v628
    %vm1048 = vweird.f32 %v1042
    %vm1049 = vmor %vm1047, %vm1048
    %v1050 = vsel %vm1049, %v1042, %v1046
    %v1051 = vand.u32 2147483647, %v628
    %vm1052 = vcmp.eq.f32.partialorder %v1051, 8.507059e+37
    %v1053 = vand.u32 %v628, 2147483648
    %v1054 = vor.u32 1.1754944e-38, %v1053
    %v1055 = vsel %vm1052, %v1054, %v1050
    %v1056 = vmul.f32 2.0, %v1055
    %v1057 = vrcp.pop %v630
    %v1058 = vmul.f32 %v630, %v1057
    %v1059 = vsub.f32 1.0, %v1058
    %v1060 = vmul.f32 %v1057, %v1059
    %v1061 = vadd.f32 %v1057, %v1060
    %vm1062 = vweird.f32 %v630
    %vm1063 = vweird.f32 %v1057
    %vm1064 = vmor %vm1062, %vm1063
    %v1065 = vsel %vm1064, %v1057, %v1061
    %v1066 = vand.u32 2147483647, %v630
    %vm1067 = vcmp.eq.f32.partialorder %v1066, 8.507059e+37
    %v1068 = vand.u32 %v630, 2147483648
    %v1069 = vor.u32 1.1754944e-38, %v1068
    %v1070 = vsel %vm1067, %v1069, %v1065
    %v1071 = vmul.f32 2.0, %v1070
    %v1072 = vrcp.pop %v632
    %v1073 = vmul.f32 %v632, %v1072
    %v1074 = vsub.f32 1.0, %v1073
    %v1075 = vmul.f32 %v1072, %v1074
    %v1076 = vadd.f32 %v1072, %v1075
    %vm1077 = vweird.f32 %v632
    %vm1078 = vweird.f32 %v1072
    %vm1079 = vmor %vm1077, %vm1078
    %v1080 = vsel %vm1079, %v1072, %v1076
    %v1081 = vand.u32 2147483647, %v632
    %vm1082 = vcmp.eq.f32.partialorder %v1081, 8.507059e+37
    %v1083 = vand.u32 %v632, 2147483648
    %v1084 = vor.u32 1.1754944e-38, %v1083
    %v1085 = vsel %vm1082, %v1084, %v1080
    %v1086 = vmul.f32 2.0, %v1085
    %v1087 = vrcp.pop %v634
    %v1088 = vmul.f32 %v634, %v1087
    %v1089 = vsub.f32 1.0, %v1088
    %v1090 = vmul.f32 %v1087, %v1089
    %v1091 = vadd.f32 %v1087, %v1090
    %vm1092 = vweird.f32 %v634
    %vm1093 = vweird.f32 %v1087
    %vm1094 = vmor %vm1092, %vm1093
    %v1095 = vsel %vm1094, %v1087, %v1091
    %v1096 = vand.u32 2147483647, %v634
    %vm1097 = vcmp.eq.f32.partialorder %v1096, 8.507059e+37
    %v1098 = vand.u32 %v634, 2147483648
    %v1099 = vor.u32 1.1754944e-38, %v1098
    %v1100 = vsel %vm1097, %v1099, %v1095
    %v1101 = vmul.f32 2.0, %v1100
    %v1102 = vrcp.pop %v636
    %v1103 = vmul.f32 %v636, %v1102
    %v1104 = vsub.f32 1.0, %v1103
    %v1105 = vmul.f32 %v1102, %v1104
    %v1106 = vadd.f32 %v1102, %v1105
    %vm1107 = vweird.f32 %v636
    %vm1108 = vweird.f32 %v1102
    %vm1109 = vmor %vm1107, %vm1108
    %v1110 = vsel %vm1109, %v1102, %v1106
    %v1111 = vand.u32 2147483647, %v636
    %vm1112 = vcmp.eq.f32.partialorder %v1111, 8.507059e+37
    %v1113 = vand.u32 %v636, 2147483648
    %v1114 = vor.u32 1.1754944e-38, %v1113
    %v1115 = vsel %vm1112, %v1114, %v1110
    %v1116 = vmul.f32 2.0, %v1115
    %v1117 = vadd.s32 %v185, 2147483648
    %vm1119 = vcmp.ge.s32.totalorder %v1117, 0
    %v1120 = vadd.s32 %v186, 2147483648
    %vm1122 = vcmp.ge.s32.totalorder %v1120, 0
    %v1123 = vadd.s32 %v187, 2147483648
    %vm1125 = vcmp.ge.s32.totalorder %v1123, 0
    %v1126 = vadd.s32 %v188, 2147483648
    %vm1128 = vcmp.ge.s32.totalorder %v1126, 0
    %v1129 = vadd.s32 %v189, 2147483648
    %vm1131 = vcmp.ge.s32.totalorder %v1129, 0
    %v1132 = vadd.s32 %v190, 2147483648
    %vm1134 = vcmp.ge.s32.totalorder %v1132, 0
    %v1135 = vadd.s32 %v191, 2147483648
    %vm1137 = vcmp.ge.s32.totalorder %v1135, 0
    %v1138 = vadd.s32 %v192, 2147483648
    %vm1140 = vcmp.ge.s32.totalorder %v1138, 0
    %v1141 = vadd.s32 %v193, 2147483648
    %vm1143 = vcmp.ge.s32.totalorder %v1141, 0
    %v1144 = vadd.s32 %v194, 2147483648
    %vm1146 = vcmp.ge.s32.totalorder %v1144, 0
    %v1147 = vadd.s32 %v195, 2147483648
    %vm1149 = vcmp.ge.s32.totalorder %v1147, 0
    %v1150 = vadd.s32 %v196, 2147483648
    %vm1152 = vcmp.ge.s32.totalorder %v1150, 0
    %v1153 = vadd.s32 %v197, 2147483648
    %vm1155 = vcmp.ge.s32.totalorder %v1153, 0
    %v1156 = vadd.s32 %v198, 2147483648
    %vm1158 = vcmp.ge.s32.totalorder %v1156, 0
    %v1159 = vadd.s32 %v199, 2147483648
    %vm1161 = vcmp.ge.s32.totalorder %v1159, 0
    %v1162 = vadd.s32 %v200, 2147483648
    %vm1164 = vcmp.ge.s32.totalorder %v1162, 0
    %v1165 = vadd.s32 %v201, 2147483648
    %vm1167 = vcmp.ge.s32.totalorder %v1165, 0
    %v1168 = vadd.s32 %v202, 2147483648
    %vm1170 = vcmp.ge.s32.totalorder %v1168, 0
    %v1171 = vadd.s32 %v203, 2147483648
    %vm1173 = vcmp.ge.s32.totalorder %v1171, 0
    %v1174 = vadd.s32 %v204, 2147483648
    %vm1176 = vcmp.ge.s32.totalorder %v1174, 0
    %v1177 = vadd.s32 %v205, 2147483648
    %vm1179 = vcmp.ge.s32.totalorder %v1177, 0
    %v1180 = vadd.s32 %v206, 2147483648
    %vm1182 = vcmp.ge.s32.totalorder %v1180, 0
    %v1183 = vadd.s32 %v207, 2147483648
    %vm1185 = vcmp.ge.s32.totalorder %v1183, 0
    %v1186 = vadd.s32 %v208, 2147483648
    %vm1188 = vcmp.ge.s32.totalorder %v1186, 0
    %v1189 = vadd.s32 %v209, 2147483648
    %vm1191 = vcmp.ge.s32.totalorder %v1189, 0
    %v1192 = vadd.s32 %v210, 2147483648
    %vm1194 = vcmp.ge.s32.totalorder %v1192, 0
    %v1195 = vadd.s32 %v211, 2147483648
    %vm1197 = vcmp.ge.s32.totalorder %v1195, 0
    %v1198 = vadd.s32 %v212, 2147483648
    %vm1200 = vcmp.ge.s32.totalorder %v1198, 0
    %v1201 = vadd.s32 %v213, 2147483648
    %vm1203 = vcmp.ge.s32.totalorder %v1201, 0
    %v1204 = vadd.s32 %v214, 2147483648
    %vm1206 = vcmp.ge.s32.totalorder %v1204, 0
    %v1207 = vadd.s32 %v215, 2147483648
    %vm1209 = vcmp.ge.s32.totalorder %v1207, 0
    %v1210 = vadd.s32 %v216, 2147483648
    %vm1212 = vcmp.ge.s32.totalorder %v1210, 0
    %v1213 = vmul.f32 %v510, %v651
    %v1214 = vmul.f32 %v512, %v666
    %v1215 = vmul.f32 %v514, %v681
    %v1216 = vmul.f32 %v516, %v696
    %v1217 = vmul.f32 %v518, %v711
    %v1218 = vmul.f32 %v520, %v726
    %v1219 = vmul.f32 %v522, %v741
    %v1220 = vmul.f32 %v524, %v756
    %v1221 = vmul.f32 %v526, %v771
    %v1222 = vmul.f32 %v528, %v786
    %v1223 = vmul.f32 %v530, %v801
    %v1224 = vmul.f32 %v532, %v816
    %v1225 = vmul.f32 %v534, %v831
    %v1226 = vmul.f32 %v536, %v846
    %v1227 = vmul.f32 %v538, %v861
    %v1228 = vmul.f32 %v540, %v876
    %v1229 = vmul.f32 %v542, %v891
    %v1230 = vmul.f32 %v544, %v906
    %v1231 = vmul.f32 %v546, %v921
    %v1232 = vmul.f32 %v548, %v936
    %v1233 = vmul.f32 %v550, %v951
    %v1234 = vmul.f32 %v552, %v966
    %v1235 = vmul.f32 %v554, %v981
    %v1236 = vmul.f32 %v556, %v996
    %v1237 = vmul.f32 %v558, %v1011
    %v1238 = vmul.f32 %v560, %v1026
    %v1239 = vmul.f32 %v562, %v1041
    %v1240 = vmul.f32 %v564, %v1056
    %v1241 = vmul.f32 %v566, %v1071
    %v1242 = vmul.f32 %v568, %v1086
    %v1243 = vmul.f32 %v570, %v1101
    %v1244 = vmul.f32 %v572, %v1116
    %v1245 = vsel %vm1119, %v1213, 0.0
    %v1246 = vsel %vm1122, %v1214, 0.0
    %v1247 = vsel %vm1125, %v1215, 0.0
    %v1248 = vsel %vm1128, %v1216, 0.0
    %v1249 = vsel %vm1131, %v1217, 0.0
    %v1250 = vsel %vm1134, %v1218, 0.0
    %v1251 = vsel %vm1137, %v1219, 0.0
    %v1252 = vsel %vm1140, %v1220, 0.0
    %v1253 = vsel %vm1143, %v1221, 0.0
    %v1254 = vsel %vm1146, %v1222, 0.0
    %v1255 = vsel %vm1149, %v1223, 0.0
    %v1256 = vsel %vm1152, %v1224, 0.0
    %v1257 = vsel %vm1155, %v1225, 0.0
    %v1258 = vsel %vm1158, %v1226, 0.0
    %v1259 = vsel %vm1161, %v1227, 0.0
    %v1260 = vsel %vm1164, %v1228, 0.0
    %v1261 = vsel %vm1167, %v1229, 0.0
    %v1262 = vsel %vm1170, %v1230, 0.0
    %v1263 = vsel %vm1173, %v1231, 0.0
    %v1264 = vsel %vm1176, %v1232, 0.0
    %v1265 = vsel %vm1179, %v1233, 0.0
    %v1266 = vsel %vm1182, %v1234, 0.0
    %v1267 = vsel %vm1185, %v1235, 0.0
    %v1268 = vsel %vm1188, %v1236, 0.0
    %v1269 = vsel %vm1191, %v1237, 0.0
    %v1270 = vsel %vm1194, %v1238, 0.0
    %v1271 = vsel %vm1197, %v1239, 0.0
    %v1272 = vsel %vm1200, %v1240, 0.0
    %v1273 = vsel %vm1203, %v1241, 0.0
    %v1274 = vsel %vm1206, %v1242, 0.0
    %v1275 = vsel %vm1209, %v1243, 0.0
    %v1276 = vsel %vm1212, %v1244, 0.0
    %1277 = vst [vmem:[#allocation10] sm:$0xff] %v1245
    %1278 = vst [vmem:[#allocation10 + $0x8] sm:$0xff] %v1246
    %1279 = vst [vmem:[#allocation10 + $0x10] sm:$0xff] %v1247
    %1280 = vst [vmem:[#allocation10 + $0x18] sm:$0xff] %v1248
    %1281 = vst [vmem:[#allocation10 + $0x20] sm:$0xff] %v1249
    %1282 = vst [vmem:[#allocation10 + $0x28] sm:$0xff] %v1250
    %1283 = vst [vmem:[#allocation10 + $0x30] sm:$0xff] %v1251
    %1284 = vst [vmem:[#allocation10 + $0x38] sm:$0xff] %v1252
    %1285 = vst [vmem:[#allocation10 + $0x40] sm:$0xff] %v1253
    %1286 = vst [vmem:[#allocation10 + $0x48] sm:$0xff] %v1254
    %1287 = vst [vmem:[#allocation10 + $0x50] sm:$0xff] %v1255
    %1288 = vst [vmem:[#allocation10 + $0x58] sm:$0xff] %v1256
    %1289 = vst [vmem:[#allocation10 + $0x60] sm:$0xff] %v1257
    %1290 = vst [vmem:[#allocation10 + $0x68] sm:$0xff] %v1258
    %1291 = vst [vmem:[#allocation10 + $0x70] sm:$0xff] %v1259
    %1292 = vst [vmem:[#allocation10 + $0x78] sm:$0xff] %v1260
    %1293 = vst [vmem:[#allocation10 + $0x80] sm:$0xff] %v1261
    %1294 = vst [vmem:[#allocation10 + $0x88] sm:$0xff] %v1262
    %1295 = vst [vmem:[#allocation10 + $0x90] sm:$0xff] %v1263
    %1296 = vst [vmem:[#allocation10 + $0x98] sm:$0xff] %v1264
    %1297 = vst [vmem:[#allocation10 + $0xa0] sm:$0xff] %v1265
    %1298 = vst [vmem:[#allocation10 + $0xa8] sm:$0xff] %v1266
    %1299 = vst [vmem:[#allocation10 + $0xb0] sm:$0xff] %v1267
    %1300 = vst [vmem:[#allocation10 + $0xb8] sm:$0xff] %v1268
    %1301 = vst [vmem:[#allocation10 + $0xc0] sm:$0xff] %v1269
    %1302 = vst [vmem:[#allocation10 + $0xc8] sm:$0xff] %v1270
    %1303 = vst [vmem:[#allocation10 + $0xd0] sm:$0xff] %v1271
    %1304 = vst [vmem:[#allocation10 + $0xd8] sm:$0xff] %v1272
    %1305 = vst [vmem:[#allocation10 + $0xe0] sm:$0xff] %v1273
    %1306 = vst [vmem:[#allocation10 + $0xe8] sm:$0xff] %v1274
    %1307 = vst [vmem:[#allocation10 + $0xf0] sm:$0xff] %v1275
    %1308 = vst [vmem:[#allocation10 + $0xf8] sm:$0xff] %v1276
    // Predicated region
    $region34: #{tpu_custom_call.1} parent=1 // pred_check
      _
    $region35: #{tpu_custom_call.1} parent=1 // pred_check_branch
      %1310 = sbr.rel (0) target = $region37
    $region36: #{tpu_custom_call.1} parent=1 // pred_region
      %1312 = vsyncadd [#allocation4], 0
      %s1313 = sshll.u32 [#allocation10], 4
      %s1314 = int_to_ptr.vmem [resolvable:$true] %s1313
      %s1315 = sshll.u32 %s4, 4
      %s1316 = int_to_ptr.hbm [resolvable:$true] %s1315
      %1321 = dma.vmem_to_hbm [thread:$0]  %s1314, 4096, %s1316, [#allocation4], 128, 128, 8
    $region37: #{tpu_custom_call.1} parent=1 // pred_fallthru
      _
    // Predicated region
    $region38: #{tpu_custom_call.1} parent=1 // pred_check
      _
    $region39: #{tpu_custom_call.1} parent=1 // pred_check_branch
      %1323 = sbr.rel (0) target = $region41
    $region40: #{tpu_custom_call.1} parent=1 // pred_region
      %1325 = dma.done [#allocation4], 4096
    $region41: #{tpu_custom_call.1} parent=1 // pred_fallthru
      _
    %1326 = vsyncpa [#allocation3], 1
    %1327 = vsyncpa [#allocation6], 1
    %1328 = vsyncpa [#allocation9], 1
    %1329 = vsyncpa [#allocation4], 1

</llo_original>
